<compile_context>
chip_gen: v7x
topology: tpu7x:2x2x1
jax: 0.10.0
libtpu: 0.0.40
codegen_flags: <defaults>
</compile_context>

<pallas_src>
import numpy as np
import jax
import jax.numpy as jnp
from jax import lax
from jax.experimental import pallas as pl
from jax.experimental.pallas import tpu as pltpu

LANE = 128                      # lane width; channel dims are padded to this

_VMEM_LIMIT_CACHE = None


def _vmem_limit():
    """Generation-aware scoped-VMEM budget (feedback: don't cap v5e/v6e at 32MiB)."""
    global _VMEM_LIMIT_CACHE
    if _VMEM_LIMIT_CACHE is None:
        limit = 32 * 1024 * 1024          # safe fallback for every generation
        try:
            info = pltpu.get_tpu_info()
            cap = None
            for name in ("vmem_capacity_bytes", "vmem_bytes", "vmem_size_bytes"):
                v = getattr(info, name, None)
                if isinstance(v, int) and v > 0:
                    cap = v
                    break
            if cap is not None:
                # ~3/4 of physical VMEM, capped: ~96MiB on v5e/v6e, ~48MiB on v7x.
                limit = int(min(cap * 3 // 4, 100 * 1024 * 1024))
        except Exception:
            pass
        _VMEM_LIMIT_CACHE = limit
    return _VMEM_LIMIT_CACHE


def _round_up(x, m):
    return (x + m - 1) // m * m


def _pick_tile_m(m_total, want):
    """Largest multiple-of-8 divisor of m_total that is <= want (no pad / slice)."""
    want = max(8, min(want, m_total))
    for cand in range(want, 7, -1):
        if m_total % cand == 0 and cand % 8 == 0:
            return cand
    return m_total                      # full-extent block is always legal


# ----------------------- fused 1x1 conv (+cat) kernel -----------------------

def _make_pw_kernel(num_segments):
    """Matmul over `num_segments` channel segments + bias + SiLU."""
    def kernel(*refs):
        xs = refs[:num_segments]
        ws = refs[num_segments:2 * num_segments]
        b_ref = refs[2 * num_segments]
        o_ref = refs[2 * num_segments + 1]
        acc = jnp.dot(xs[0][...], ws[0][...], preferred_element_type=jnp.float32)
        for s in range(1, num_segments):
            acc = acc + jnp.dot(xs[s][...], ws[s][...],
                                preferred_element_type=jnp.float32)
        y = acc + b_ref[...]
        y = y * jax.nn.sigmoid(y)            # SiLU (f32 epilogue)
        o_ref[...] = y.astype(o_ref.dtype)
    return kernel


def pw_conv_bn_silu(xs, ws, bias, *, tile_m=512):
    """Fused 1x1 conv (BN scale pre-folded into w) + bias + SiLU.

    xs:   list of NHWC activations (same N,H,W; channels padded to LANE mult).
    ws:   list of (K_s, Coutp) folded weights, one per segment.
    bias: (Coutp,) f32.
    The sum over segments implements the `cv2(torch.cat(y, 1))` fusion.
    Returns (N, H, W, Coutp).
    """
    N, H, W, _ = xs[0].shape
    coutp = ws[0].shape[1]
    M = N * H * W
    tile_m = _pick_tile_m(M, tile_m)     # divides M -> no pad / out[:M] copies

    x2ds = [x.reshape(M, x.shape[-1]) for x in xs]

    in_specs = []
    for x2 in x2ds:
        K = x2.shape[-1]
        in_specs.append(pl.BlockSpec((tile_m, K), lambda i: (i, 0)))
    for w in ws:
        K = w.shape[0]
        in_specs.append(pl.BlockSpec((K, coutp), lambda i: (0, 0)))
    in_specs.append(pl.BlockSpec((1, coutp), lambda i: (0, 0)))

    # TODO(synk): for production channel counts on v7x add a K/segment grid axis
    # ("arbitrary", last) with an f32 VMEM accumulator, and single-buffer the
    # constant weight/bias specs, to bound the resident working set.
    out = pl.pallas_call(
        _make_pw_kernel(len(xs)),
        grid=(M // tile_m,),
        in_specs=in_specs,
        out_specs=pl.BlockSpec((tile_m, coutp), lambda i: (i, 0)),
        out_shape=jax.ShapeDtypeStruct((M, coutp), xs[0].dtype),
        compiler_params=pltpu.CompilerParams(
            dimension_semantics=("parallel",),
            vmem_limit_bytes=_vmem_limit()),
    )(*x2ds, *ws, bias.reshape(1, coutp))
    return out.reshape(N, H, W, coutp)


# --------------------------- fused 3x3 conv kernel ---------------------------

def _make_conv3x3_kernel(tile_h, H, W, cin, cout, chan_off, num_rt, add_residual):
    """3x3 'same' conv, ky-grouped matmuls, manual double-buffered halo DMA."""

    def issue_dmas(x_hbm, xbuf, sem, b, r, slot):
        # Fetch rows [r*tile_h - 1, r*tile_h + tile_h + 1) of image `b`,
        # channel block [chan_off, chan_off + cin).  Edge rows are clamped
        # in-bounds and zero-masked at compute time.
        row0 = r * tile_h
        top = jnp.maximum(row0 - 1, 0)
        bot = jnp.minimum(row0 + tile_h, H - 1)
        ch = pl.ds(chan_off, cin)
        pltpu.make_async_copy(
            x_hbm.at[b, pl.ds(row0, tile_h), :, ch],
            xbuf.at[slot, pl.ds(1, tile_h), :, :], sem.at[slot]).start()
        pltpu.make_async_copy(
            x_hbm.at[b, pl.ds(top, 1), :, ch],
            xbuf.at[slot, pl.ds(0, 1), :, :], sem.at[slot]).start()
        pltpu.make_async_copy(
            x_hbm.at[b, pl.ds(bot, 1), :, ch],
            xbuf.at[slot, pl.ds(tile_h + 1, 1), :, :], sem.at[slot]).start()

    def wait_dmas(x_hbm, xbuf, sem, slot):
        ch = pl.ds(chan_off, cin)
        pltpu.make_async_copy(
            x_hbm.at[0, pl.ds(0, tile_h), :, ch],
            xbuf.at[slot, pl.ds(1, tile_h), :, :], sem.at[slot]).wait()
        pltpu.make_async_copy(
            x_hbm.at[0, pl.ds(0, 1), :, ch],
            xbuf.at[slot, pl.ds(0, 1), :, :], sem.at[slot]).wait()
        pltpu.make_async_copy(
            x_hbm.at[0, pl.ds(0, 1), :, ch],
            xbuf.at[slot, pl.ds(tile_h + 1, 1), :, :], sem.at[slot]).wait()

    def kernel(*refs):
        if add_residual:
            x_hbm, w_ref, b_ref, res_ref, o_ref, xbuf, sem = refs
        else:
            x_hbm, w_ref, b_ref, o_ref, xbuf, sem = refs
            res_ref = None
        b = pl.program_id(0)            # batch axis ("parallel")
        r = pl.program_id(1)            # row-tile axis ("arbitrary": carries DMA state)
        slot = r % 2

        @pl.when(r == 0)                # prime the pipeline once per image
        def _():
            issue_dmas(x_hbm, xbuf, sem, b, r, slot)

        @pl.when(r + 1 < num_rt)        # prefetch next row tile of this image
        def _():
            issue_dmas(x_hbm, xbuf, sem, b, r + 1, 1 - slot)

        wait_dmas(x_hbm, xbuf, sem, slot)

        xall = xbuf[slot]               # (tile_h+2, W, cin)
        # Zero the top/bottom halo rows at the image boundary (they were DMA'd
        # from a clamped in-bounds row and must act as 'same' zero padding).
        row_idx = lax.broadcasted_iota(jnp.int32, xall.shape, 0)
        halo_oob = ((row_idx == 0) & (r == 0)) | (
            (row_idx == tile_h + 1) & (r == num_rt - 1))
        xall = jnp.where(halo_oob, jnp.zeros_like(xall), xall)

        # Group the 3 vertical (ky) taps along the channel axis: K = 3*cin.
        big = jnp.concatenate(
            [xall[0:tile_h], xall[1:tile_h + 1], xall[2:tile_h + 2]],
            axis=-1)                     # (tile_h, W, 3*cin)
        k3 = 3 * cin
        mrows = tile_h * W

        # kx = 1 (unshifted): accumulator initialized from the first dot.
        acc = jnp.dot(big.reshape(mrows, k3), w_ref[1],
                      preferred_element_type=jnp.float32)
        zcol = jnp.zeros((tile_h, 1, k3), big.dtype)
        # kx = 0: needs column x-1 (zero at x=0).
        left = jnp.concatenate([zcol, big[:, :W - 1, :]], axis=1)
        acc = acc + jnp.dot(left.reshape(mrows, k3), w_ref[0],
                            preferred_element_type=jnp.float32)
        # kx = 2: needs column x+1 (zero at x=W-1).
        right = jnp.concatenate([big[:, 1:, :], zcol], axis=1)
        acc = acc + jnp.dot(right.reshape(mrows, k3), w_ref[2],
                            preferred_element_type=jnp.float32)

        y = acc + b_ref[...]
        y = y * jax.nn.sigmoid(y)        # SiLU (f32 epilogue)
        y = y.reshape(1, tile_h, W, cout)
        if add_residual:
            y = y + res_ref[...].astype(jnp.float32)
        o_ref[...] = y.astype(o_ref.dtype)

    return kernel


def conv3x3_bn_silu(x, w_groups, bias, *, chan_off=0, cin=None,
                    residual=None, residual_chan_block=0, tile_h=None):
    """Fused 3x3 'same' conv (BN folded) + SiLU (+ optional residual add).

    x:        (N, H, W, Ctot) NHWC; channels [chan_off, chan_off+cin) are used
              (the channel slice happens inside the halo DMA -- no HBM copy).
    w_groups: (3, 3*cin, cout); index kx, K-rows ordered ky-major, BN folded in.
    bias:     (cout,) f32.
    residual: optional NHWC array; channel block `residual_chan_block` (width
              cout) is added post-activation via a BlockSpec (no slice copy).
    """
    N, H, W, Ctot = x.shape
    if cin is None:
        cin = Ctot
    cout = w_groups.shape[-1]
    if tile_h is None:
        tile_h = 8 if H % 8 == 0 else H   # production: sweep 8-32 on v5e/v6e
    assert H % tile_h == 0
    num_rt = H // tile_h

    kernel = _make_conv3x3_kernel(tile_h, H, W, cin, cout, chan_off, num_rt,
                                  residual is not None)

    args = [x, w_groups, bias.reshape(1, cout)]
    in_specs = [
        pl.BlockSpec(memory_space=pl.ANY),                  # manual halo DMA
        pl.BlockSpec((3, 3 * cin, cout), lambda b, r: (0, 0, 0)),
        pl.BlockSpec((1, cout), lambda b, r: (0, 0)),
    ]
    if residual is not None:
        rcb = residual_chan_block
        args.append(residual)
        in_specs.append(
            pl.BlockSpec((1, tile_h, W, cout), lambda b, r: (b, r, 0, rcb)))

    # TODO(synk): fuse the bottleneck's two 3x3 convs (keep `h` in VMEM) and
    # parallelize the row axis when N == 1 so both v7x TensorCores get work.
    return pl.pallas_call(
        kernel,
        grid=(N, num_rt),
        in_specs=in_specs,
        out_specs=pl.BlockSpec((1, tile_h, W, cout), lambda b, r: (b, r, 0, 0)),
        out_shape=jax.ShapeDtypeStruct((N, H, W, cout), x.dtype),
        scratch_shapes=[
            pltpu.VMEM((2, tile_h + 2, W, cin), x.dtype),   # double-buffered halo
            pltpu.SemaphoreType.DMA((2,)),
        ],
        compiler_params=pltpu.CompilerParams(
            dimension_semantics=("parallel", "arbitrary"),
            vmem_limit_bytes=_vmem_limit()),
    )(*args)


# ------------------------------- parameters -------------------------------

def _init_conv_bn(key, cin, cout, k):
    kw, kg, kb, km, kv = jax.random.split(key, 5)
    if k == 1:
        w = jax.random.normal(kw, (cin, cout), jnp.float32) * 0.2
    else:
        w = jax.random.normal(kw, (k * k, cin, cout), jnp.float32) * 0.2
    gamma = 1.0 + 0.1 * jax.random.normal(kg, (cout,), jnp.float32)
    beta = 0.05 * jax.random.normal(kb, (cout,), jnp.float32)
    running_mean = 0.05 * jax.random.normal(km, (cout,), jnp.float32)
    running_var = 1.0 + 0.1 * jax.random.uniform(kv, (cout,), jnp.float32)
    eps = 1e-5
    scale = gamma / jnp.sqrt(running_var + eps)     # eval-mode folded BN
    bias = beta - running_mean * scale
    return {"w": w, "scale": scale, "bias": bias}


def init_c2f_params(key, c1, c2, n=1, e=0.5):
    c = int(c2 * e)
    keys = jax.random.split(key, 2 + 2 * n)
    return {
        "c": c,
        "cv1": _init_conv_bn(keys[0], c1, 2 * c, 1),
        "cv2": _init_conv_bn(keys[1], (2 + n) * c, c2, 1),
        "m": [{"cv1": _init_conv_bn(keys[2 + 2 * i], c, c, 3),
               "cv2": _init_conv_bn(keys[3 + 2 * i], c, c, 3)}
              for i in range(n)],
    }


def pack_c2f_params(params, dtype=jnp.float32):
    """Fold BN scale (in f32) into conv weights and pad channels to LANE mults.

    cv1's two output halves are laid out as two LANE-aligned channel blocks so
    the torch.chunk is free; cv2's weight is split into per-segment matrices so
    torch.cat folds into summed matmuls; 3x3 weights are packed as (3, 3*cp, cp)
    grouped along ky for the K=3*Cin matmuls.  Biases stay f32.
    """
    c = params["c"]
    c1 = params["cv1"]["w"].shape[0]
    c2 = params["cv2"]["w"].shape[1]
    n = len(params["m"])
    cp = _round_up(c, LANE)
    c1p = _round_up(c1, LANE)
    c2p = _round_up(c2, LANE)
    f32 = jnp.float32

    # cv1: (c1, 2c) -> (c1p, 2*cp), two LANE-aligned halves.
    w = params["cv1"]["w"] * params["cv1"]["scale"][None, :]
    b = params["cv1"]["bias"]
    w_cv1 = jnp.zeros((c1p, 2 * cp), f32)
    w_cv1 = w_cv1.at[:c1, :c].set(w[:, :c]).at[:c1, cp:cp + c].set(w[:, c:])
    b_cv1 = jnp.zeros((2 * cp,), f32).at[:c].set(b[:c]).at[cp:cp + c].set(b[c:])

    # bottlenecks: (9, c, c) -> grouped (3, 3*cp, cp), index kx, rows ky-major.
    m = []
    for bp in params["m"]:
        blk = {}
        for src, wname, bname in (("cv1", "w1", "b1"), ("cv2", "w2", "b2")):
            wt = bp[src]["w"] * bp[src]["scale"][None, None, :]   # (9, c, c)
            wp = jnp.zeros((9, cp, cp), f32).at[:, :c, :c].set(wt)
            wg = wp.reshape(3, 3, cp, cp).transpose(1, 0, 2, 3).reshape(
                3, 3 * cp, cp)                                    # [kx, ky*cp+cin, cout]
            bb = jnp.zeros((cp,), f32).at[:c].set(bp[src]["bias"])
            blk[wname] = wg.astype(dtype)
            blk[bname] = bb
        m.append(blk)

    # cv2: ((2+n)c, c2) split into (2+n) segments matching the un-concatenated
    # activations (segment 0 = cv1 output's 2 halves, then each bottleneck out).
    w = params["cv2"]["w"] * params["cv2"]["scale"][None, :]
    b = params["cv2"]["bias"]
    seg0 = jnp.zeros((2 * cp, c2p), f32)
    seg0 = seg0.at[:c, :c2].set(w[:c]).at[cp:cp + c, :c2].set(w[c:2 * c])
    w_cv2 = [seg0.astype(dtype)]
    for i in range(n):
        seg = jnp.zeros((cp, c2p), f32).at[:c, :c2].set(
            w[2 * c + i * c: 2 * c + (i + 1) * c])
        w_cv2.append(seg.astype(dtype))
    b_cv2 = jnp.zeros((c2p,), f32).at[:c2].set(b)

    return {"c": c, "c2": c2, "c_pad": cp, "c1_pad": c1p, "dtype": dtype,
            "w_cv1": w_cv1.astype(dtype), "b_cv1": b_cv1,
            "m": m, "w_cv2": w_cv2, "b_cv2": b_cv2}


# --------------------------- C2f forward (Pallas) ---------------------------

def c2f_forward(x_nhwc, kp, shortcut=False, *, tile_m=256, tile_h=None):
    """C2f forward.  x_nhwc: (N, H, W, c1) unpadded.  Returns (N, H, W, c2).

    tile_m=256 keeps multi-tile grids even at toy test shapes; use 1024-2048
    on v5e/v6e (and ~512-1024 on v7x) for production-sized inputs.
    """
    dtype = kp["dtype"]
    cp = kp["c_pad"]
    c1p = kp["c1_pad"]
    N, H, W, c1 = x_nhwc.shape
    x = x_nhwc.astype(dtype)
    if c1p != c1:
        x = jnp.pad(x, ((0, 0), (0, 0), (0, 0), (0, c1p - c1)))

    # cv1 (1x1): output already holds both chunk() halves as two LANE-aligned
    # channel blocks -> no chunk copy.
    y = pw_conv_bn_silu([x], [kp["w_cv1"]], kp["b_cv1"], tile_m=tile_m)

    segs = [y]                       # inputs to the final fused 1x1
    prev_arr, prev_off = y, cp       # bottleneck chain starts at y[..., cp:2cp]
    for blk in kp["m"]:
        # channel slice happens inside the halo DMA (chan_off) -> no HBM copy.
        h = conv3x3_bn_silu(prev_arr, blk["w1"], blk["b1"],
                            chan_off=prev_off, cin=cp, tile_h=tile_h)
        out = conv3x3_bn_silu(h, blk["w2"], blk["b2"],
                              chan_off=0, cin=cp, tile_h=tile_h,
                              residual=prev_arr if shortcut else None,
                              residual_chan_block=prev_off // cp)
        segs.append(out)
        prev_arr, prev_off = out, 0

    # cv2 (1x1) over all segments: torch.cat folded into summed matmuls.
    out = pw_conv_bn_silu(segs, kp["w_cv2"], kp["b_cv2"], tile_m=tile_m)
    return out[..., :kp["c2"]]


# ----------------------------- pure-JAX reference -----------------------------

def _ref_conv(x, w_hwio, scale, bias):
    y = lax.conv_general_dilated(x, w_hwio, (1, 1), "SAME",
                                 dimension_numbers=("NHWC", "HWIO", "NHWC"))
    y = y * scale + bias
    return y * jax.nn.sigmoid(y)


def c2f_reference(x_nhwc, params, shortcut=False):
    c = params["c"]
    cv1 = params["cv1"]
    y = _ref_conv(x_nhwc, cv1["w"].reshape(1, 1, *cv1["w"].shape),
                  cv1["scale"], cv1["bias"])
    ys = [y[..., :c], y[..., c:]]
    for bp in params["m"]:
        prev = ys[-1]
        w1 = bp["cv1"]["w"].reshape(3, 3, *bp["cv1"]["w"].shape[1:])
        w2 = bp["cv2"]["w"].reshape(3, 3, *bp["cv2"]["w"].shape[1:])
        h = _ref_conv(prev, w1, bp["cv1"]["scale"], bp["cv1"]["bias"])
        out = _ref_conv(h, w2, bp["cv2"]["scale"], bp["cv2"]["bias"])
        if shortcut:
            out = out + prev
        ys.append(out)
    cat = jnp.concatenate(ys, axis=-1)
    cv2 = params["cv2"]
    return _ref_conv(cat, cv2["w"].reshape(1, 1, *cv2["w"].shape),
                     cv2["scale"], cv2["bias"])


# ------------------------------------ main ------------------------------------

if __name__ == "__main__":
    key = jax.random.PRNGKey(0)
    kx, kparam = jax.random.split(key)

    c1, c2, n = 4, 8, 1
    N, H, W = 2, 16, 16

    # PyTorch-convention NCHW input, transposed to NHWC for the kernels.
    x_nchw = jax.random.normal(kx, (N, c1, H, W), jnp.float32)
    x_nhwc = jnp.transpose(x_nchw, (0, 2, 3, 1))

    raw_params = init_c2f_params(kparam, c1, c2, n=n, e=0.5)

    # f32 correctness (both shortcut configurations).
    refs = {}
    packed_f32 = pack_c2f_params(raw_params, dtype=jnp.float32)
    for shortcut in (False, True):
        out_nhwc = c2f_forward(x_nhwc, packed_f32, shortcut=shortcut)
        out_nhwc = jax.block_until_ready(out_nhwc)
        out_nchw = jnp.transpose(out_nhwc, (0, 3, 1, 2))
        assert out_nchw.shape == (N, c2, H, W), out_nchw.shape
        ref_nhwc = c2f_reference(x_nhwc, raw_params, shortcut=shortcut)
        refs[shortcut] = ref_nhwc
        np.testing.assert_allclose(np.asarray(out_nhwc), np.asarray(ref_nhwc),
                                   rtol=2e-4, atol=2e-4)

    # bf16 path (recommended on v6e/v7x): bf16 activations/weights, f32 accum.
    packed_bf16 = pack_c2f_params(raw_params, dtype=jnp.bfloat16)
    out_bf16 = c2f_forward(x_nhwc, packed_bf16, shortcut=False)
    out_bf16 = jax.block_until_ready(out_bf16)
    max_err = float(jnp.max(jnp.abs(out_bf16.astype(jnp.float32)
                                    - refs[False])))
    assert max_err < 0.25, f"bf16 path diverged: max_err={max_err}"

    print("KERNEL_OK")
</pallas_src>

<mosaic_0001>
module attributes {stable_mosaic.version = 11 : i64} {
  func.func @kernel(%arg0: i32, %arg1: memref<256x128xf32, #tpu.memory_space<vmem>>, %arg2: memref<128x256xf32, #tpu.memory_space<vmem>>, %arg3: memref<1x256xf32, #tpu.memory_space<vmem>>, %arg4: memref<256x256xf32, #tpu.memory_space<vmem>>) attributes {dimension_semantics = [#tpu.dimension_semantics<parallel>], iteration_bounds = array<i64: 2>, scalar_prefetch = 0 : i64, scratch_operands = 0 : i64, tpu.core_type = #tpu.core_type<tc>, window_params = [{transform_indices = @transform_0, window_bounds = array<i64: 256, 128>}, {pipeline_mode = #tpu.pipeline_mode<synchronous>, transform_indices = @transform_1, window_bounds = array<i64: 128, 256>}, {pipeline_mode = #tpu.pipeline_mode<synchronous>, transform_indices = @transform_2, window_bounds = array<i64: 1, 256>}, {transform_indices = @transform_3, window_bounds = array<i64: 256, 256>}]} {
    %c0 = arith.constant 0 : index
    %c0_0 = arith.constant 0 : index
    %0 = vector.load %arg1[%c0, %c0_0] : memref<256x128xf32, #tpu.memory_space<vmem>>, vector<256x128xf32>
    %c0_1 = arith.constant 0 : index
    %c0_2 = arith.constant 0 : index
    %1 = vector.load %arg2[%c0_1, %c0_2] : memref<128x256xf32, #tpu.memory_space<vmem>>, vector<128x256xf32>
    %cst = arith.constant dense<0.000000e+00> : vector<256x256xf32>
    %2 = tpu.matmul %0, %1, %cst {dimension_numbers = #tpu.dot_dimension_numbers<[1], [0], [0], [1], [0, 0, 1, 1], [], []>} : vector<256x128xf32>, vector<128x256xf32>, vector<256x256xf32> -> vector<256x256xf32>
    %c0_3 = arith.constant 0 : index
    %c0_4 = arith.constant 0 : index
    %3 = vector.load %arg3[%c0_3, %c0_4] : memref<1x256xf32, #tpu.memory_space<vmem>>, vector<1x256xf32>
    %4 = vector.broadcast %3 : vector<1x256xf32> to vector<256x256xf32>
    %5 = arith.addf %2, %4 : vector<256x256xf32>
    %6 = arith.negf %5 : vector<256x256xf32>
    %7 = math.exp %6 : vector<256x256xf32>
    %cst_5 = arith.constant 1.000000e+00 : f32
    %8 = vector.broadcast %cst_5 : f32 to vector<256x256xf32>
    %9 = arith.addf %8, %7 : vector<256x256xf32>
    %10 = arith.divf %8, %9 : vector<256x256xf32>
    %11 = arith.mulf %5, %10 : vector<256x256xf32>
    %c0_6 = arith.constant 0 : index
    %c0_7 = arith.constant 0 : index
    %12 = vector.load %arg4[%c0_6, %c0_7] : memref<256x256xf32, #tpu.memory_space<vmem>>, vector<256x256xf32>
    tpu.vector_store %arg4[%c0_6, %c0_7], %11 {strides = array<i32>} : memref<256x256xf32, #tpu.memory_space<vmem>>, vector<256x256xf32>,
    return
  }
  func.func @transform_0(%arg0: i32) -> (i32, i32) {
    %c0_i32 = arith.constant 0 : i32
    %c0_i32_0 = arith.constant 0 : i32
    return %arg0, %c0_i32 : i32, i32
  }
  func.func @transform_1(%arg0: i32) -> (i32, i32) {
    %c0_i32 = arith.constant 0 : i32
    %c0_i32_0 = arith.constant 0 : i32
    %c0_i32_1 = arith.constant 0 : i32
    return %c0_i32, %c0_i32_0 : i32, i32
  }
  func.func @transform_2(%arg0: i32) -> (i32, i32) {
    %c0_i32 = arith.constant 0 : i32
    %c0_i32_0 = arith.constant 0 : i32
    %c0_i32_1 = arith.constant 0 : i32
    return %c0_i32, %c0_i32_0 : i32, i32
  }
  func.func @transform_3(%arg0: i32) -> (i32, i32) {
    %c0_i32 = arith.constant 0 : i32
    %c0_i32_0 = arith.constant 0 : i32
    return %arg0, %c0_i32 : i32, i32
  }
}

</mosaic_0001>

<llo_original>
// kernel: tpu_custom_call.1
$region0: #{tpu_custom_call.1}
  #allocation0 [shape = 'u32[]', space=smem, size = 0x4, offset = 0x4, fixed_abs, tag = 'smem constant byte address 0x4 - core index']
  #allocation1 [shape = 'u32[144,128]{1,0:T(1,128)}', space=vmem, size = 0x12000, scoped, tag = 'internal scratch']
  %s0 = inlined_call_operand.hbm [shape: f32[512,128], index: 0, kind: input, shape index: {}]
  %s1 = inlined_call_operand.hbm [shape: f32[128,256], index: 1, kind: input, shape index: {}]
  %s2 = inlined_call_operand.vmem [shape: f32[1,256], index: 2, kind: input, shape index: {}]
  %s3 = inlined_call_operand.hbm [shape: f32[512,256], index: 3, kind: output, shape index: {}]
  %s4 = sld [smem:[#allocation0]]
  $region53: #{tpu_custom_call.1} parent=0
    _
  %s6 = ssub.s32 1, %s4
  %s7 = scalar_select 0, %s6, %s4
  $region1: #{tpu_custom_call.1} parent=0
    #allocation2 [shape = 'u8[262144]{0}', space=vmem, size = 0x40000, scoped, tag = 'input window, operand 0']
    #allocation3 [shape = 's32[2]{0}', space=sflag, size = 0x8, scoped, tag = 'scoped memory for tpu_custom_call.1']
    #allocation4 [shape = 's32[2]{0}', space=sflag, size = 0x8, scoped, tag = 'scoped memory for tpu_custom_call.1']
    #allocation5 [shape = 'u8[131072]{0}', space=vmem, size = 0x20000, scoped, tag = 'input window, operand 1, single buffered']
    #allocation6 [shape = 's32[1]{0}', space=sflag, size = 0x4, scoped, tag = 'scoped memory for tpu_custom_call.1']
    #allocation7 [shape = 'u8[524288]{0}', space=vmem, size = 0x80000, scoped, tag = 'output window, operand 0']
    %8 = vsyncpa [#allocation3], 0
    %s9 = scalar_lea.sflag [#allocation3], 1
    %10 = vsyncpa %s9, 0
    %11 = vsyncpa [#allocation6], 0
    %12 = vsyncpa [#allocation4], 0
    %s13 = scalar_lea.sflag [#allocation4], 1
    %14 = vsyncpa %s13, 0
    loop: start=0, step=1, limit=4
    $region2: #{tpu_custom_call.1} parent=1 // loop_pre_header
      _
    $region3: #{tpu_custom_call.1} parent=1 // loop_header
      %s16 = sphi 0, %s20
      %p17 = scmp.ge.s32.totalorder %s16, 4
      %s26 = sphi 0, %s28
      %s29 = sphi 0, %s26
      %s30 = sphi 0, %s29
      %s46 = sphi 0, %s30
      %s50 = sphi 0, %s50
      %s52 = sphi 0, %s50
      %s53 = sphi 0, %s52
      %s67 = sphi 0, %s53
      %s71 = sphi 0, %s71
      %s73 = sphi 0, %s71
      %s74 = sphi 0, %s73
      %s88 = sphi 0, %s74
      %s94 = sphi 0, %s96
      %s97 = sphi 0, %s94
      %s98 = sphi 0, %s97
      %s114 = sphi 0, %s98
    $region4: #{tpu_custom_call.1} parent=1 // loop_header_branch
      %19 = sbr.rel (%p17) target = $region8
    $region5: #{tpu_custom_call.1} parent=1 // loop_body
      %s21 = ssub.s32 %s16, 1
      %s22 = ssub.s32 %s16, 2
      %s23 = sadd.s32 %s16, 1
      %s24 = ssub.s32 %s16, %s23
      %p25 = scmp.eq.s32.totalorder %s24, 0
      %s27 = sadd.s32 %s26, 1
      %s28 = scalar_select %p25, %s26, %s27
      %p31 = pneg %p25
      %p32 = scmp.eq.s32.totalorder %s16, 1
      %p33 = por %p31, %p32
      %p34 = scmp.ne.s32.totalorder %s26, %s29
      %p35 = scmp.eq.s32.totalorder %s16, 0
      %p36 = por %p34, %p35
      %p37 = scmp.ne.s32.totalorder %s26, %s29
      %p38 = scmp.eq.s32.totalorder %s21, 1
      %p39 = por %p37, %p38
      %p40 = scmp.ne.s32.totalorder %s29, %s30
      %p41 = scmp.eq.s32.totalorder %s21, 0
      %p42 = por %p40, %p41
      %p43 = scmp.ne.s32.totalorder %s29, %s30
      %p44 = scmp.eq.s32.totalorder %s22, 1
      %p45 = por %p43, %p44
      %p47 = scmp.ne.s32.totalorder %s30, %s46
      %p48 = scmp.eq.s32.totalorder %s22, 0
      %p49 = por %p47, %p48
      %s51 = sadd.s32 %s50, 1
      %p54 = scmp.eq.s32.totalorder %s16, 1
      %p55 = scmp.ne.s32.totalorder %s50, %s52
      %p56 = scmp.eq.s32.totalorder %s16, 0
      %p57 = por %p55, %p56
      %p58 = scmp.ne.s32.totalorder %s50, %s52
      %p59 = scmp.eq.s32.totalorder %s21, 1
      %p60 = por %p58, %p59
      %p61 = scmp.ne.s32.totalorder %s52, %s53
      %p62 = scmp.eq.s32.totalorder %s21, 0
      %p63 = por %p61, %p62
      %p64 = scmp.ne.s32.totalorder %s52, %s53
      %p65 = scmp.eq.s32.totalorder %s22, 1
      %p66 = por %p64, %p65
      %p68 = scmp.ne.s32.totalorder %s53, %s67
      %p69 = scmp.eq.s32.totalorder %s22, 0
      %p70 = por %p68, %p69
      %s72 = sadd.s32 %s71, 1
      %p75 = scmp.eq.s32.totalorder %s16, 1
      %p76 = scmp.ne.s32.totalorder %s71, %s73
      %p77 = scmp.eq.s32.totalorder %s16, 0
      %p78 = por %p76, %p77
      %p79 = scmp.ne.s32.totalorder %s71, %s73
      %p80 = scmp.eq.s32.totalorder %s21, 1
      %p81 = por %p79, %p80
      %p82 = scmp.ne.s32.totalorder %s73, %s74
      %p83 = scmp.eq.s32.totalorder %s21, 0
      %p84 = por %p82, %p83
      %p85 = scmp.ne.s32.totalorder %s73, %s74
      %p86 = scmp.eq.s32.totalorder %s22, 1
      %p87 = por %p85, %p86
      %p89 = scmp.ne.s32.totalorder %s74, %s88
      %p90 = scmp.eq.s32.totalorder %s22, 0
      %p91 = por %p89, %p90
      %s92 = ssub.s32 %s16, %s23
      %p93 = scmp.eq.s32.totalorder %s92, 0
      %s95 = sadd.s32 %s94, 1
      %s96 = scalar_select %p93, %s94, %s95
      %p99 = pneg %p93
      %p100 = scmp.eq.s32.totalorder %s16, 1
      %p101 = por %p99, %p100
      %p102 = scmp.ne.s32.totalorder %s94, %s97
      %p103 = scmp.eq.s32.totalorder %s16, 0
      %p104 = por %p102, %p103
      %p105 = scmp.ne.s32.totalorder %s94, %s97
      %p106 = scmp.eq.s32.totalorder %s21, 1
      %p107 = por %p105, %p106
      %p108 = scmp.ne.s32.totalorder %s97, %s98
      %p109 = scmp.eq.s32.totalorder %s21, 0
      %p110 = por %p108, %p109
      %p111 = scmp.ne.s32.totalorder %s97, %s98
      %p112 = scmp.eq.s32.totalorder %s22, 1
      %p113 = por %p111, %p112
      %p115 = scmp.ne.s32.totalorder %s98, %s114
      %p116 = scmp.eq.s32.totalorder %s22, 0
      %p117 = por %p115, %p116
      %p118 = scmp.le.s32.totalorder 1, %s16
      %p119 = scmp.lt.s32.totalorder %s16, 3
      %p120 = pnand %p118, %p119
      %p121 = pneg %p120
      // Predicated region
      $region9: #{tpu_custom_call.1} parent=5 // pred_check
        _
      $region10: #{tpu_custom_call.1} parent=5 // pred_check_branch
        %123 = sbr.rel (%p120) target = $region12
      $region11: #{tpu_custom_call.1} parent=5 // pred_region
        %s124 = ssub.s32 %s16, 1
        // Predicated region
        $region13: #{tpu_custom_call.1} parent=11 // pred_check
          %p125 = pneg %p63
        $region14: #{tpu_custom_call.1} parent=11 // pred_check_branch
          %127 = sbr.rel (%p125) target = $region16
        $region15: #{tpu_custom_call.1} parent=11 // pred_region
          %s129 = ssub.s32 4096, 4096
          %130 = vsyncadd [#allocation6], %s129
          %s131 = sshll.u32 [#allocation5], 4
          %s132 = int_to_ptr.vmem [resolvable:$true] %s131
          %137 = dma.hbm_to_vmem [thread:$0]  %s1, 4096, %s132, [#allocation6], 256, 256, 16
        $region16: #{tpu_custom_call.1} parent=11 // pred_fallthru
          _
        // Predicated region
        $region17: #{tpu_custom_call.1} parent=11 // pred_check
          %p138 = pneg %p84
        $region18: #{tpu_custom_call.1} parent=11 // pred_check_branch
          %140 = sbr.rel (%p138) target = $region20
        $region19: #{tpu_custom_call.1} parent=11 // pred_region
          _
        $region20: #{tpu_custom_call.1} parent=11 // pred_fallthru
          _
      $region12: #{tpu_custom_call.1} parent=5 // pred_fallthru
        _
      %p141 = scmp.lt.s32.totalorder %s16, 2
      // Predicated region
      $region21: #{tpu_custom_call.1} parent=5 // pred_check
        %p142 = pneg %p141
      $region22: #{tpu_custom_call.1} parent=5 // pred_check_branch
        %144 = sbr.rel (%p142) target = $region24
      $region23: #{tpu_custom_call.1} parent=5 // pred_region
        // Predicated region
        $region25: #{tpu_custom_call.1} parent=23 // pred_check
          %p145 = pneg %p36
        $region26: #{tpu_custom_call.1} parent=23 // pred_check_branch
          %147 = sbr.rel (%p145) target = $region28
        $region27: #{tpu_custom_call.1} parent=23 // pred_region
          %s148 = sand.u32 %s26, 1
          %s149 = scalar_lea.sflag [#allocation3], %s148
          %s150 = sand.u32 %s26, 1
          %s151 = smul.addr %s150, 256
          %s152 = scalar_lea.vmem [#allocation2], %s151
          %s153 = smul.u32 32, %s16
          %s155 = ssub.s32 4096, 4096
          %156 = vsyncadd %s149, %s155
          %s157 = smul.addr %s153, 128
          %s158 = scalar_lea.hbm %s0, %s157
          %s159 = sshll.u32 %s152, 4
          %s160 = int_to_ptr.vmem [resolvable:$true] %s159
          %165 = dma.hbm_to_vmem [thread:$0]  %s158, 4096, %s160, %s149, 128, 128, 8
        $region28: #{tpu_custom_call.1} parent=23 // pred_fallthru
          _
      $region24: #{tpu_custom_call.1} parent=5 // pred_fallthru
        _
      %p166 = scmp.le.s32.totalorder 1, %s16
      %p167 = scmp.lt.s32.totalorder %s16, 3
      %p168 = pnand %p166, %p167
      %p169 = pneg %p168
      // Predicated region
      $region29: #{tpu_custom_call.1} parent=5 // pred_check
        _
      $region30: #{tpu_custom_call.1} parent=5 // pred_check_branch
        %171 = sbr.rel (%p168) target = $region32
      $region31: #{tpu_custom_call.1} parent=5 // pred_region
        %s172 = ssub.s32 %s16, 1
        %s173 = sand.u32 %s29, 1
        %s174 = scalar_lea.sflag [#allocation3], %s173
        %s175 = sand.u32 %s29, 1
        %s176 = smul.addr %s175, 256
        %s177 = scalar_lea.vmem [#allocation2], %s176
        // Predicated region
        $region33: #{tpu_custom_call.1} parent=31 // pred_check
          %p178 = pneg %p42
        $region34: #{tpu_custom_call.1} parent=31 // pred_check_branch
          %180 = sbr.rel (%p178) target = $region36
        $region35: #{tpu_custom_call.1} parent=31 // pred_region
          %181 = dma.done %s174, 4096
        $region36: #{tpu_custom_call.1} parent=31 // pred_fallthru
          _
        // Predicated region
        $region37: #{tpu_custom_call.1} parent=31 // pred_check
          %p182 = pneg %p63
        $region38: #{tpu_custom_call.1} parent=31 // pred_check_branch
          %184 = sbr.rel (%p182) target = $region40
        $region39: #{tpu_custom_call.1} parent=31 // pred_region
          %185 = dma.done [#allocation6], 4096
        $region40: #{tpu_custom_call.1} parent=31 // pred_fallthru
          _
        %s186 = sand.u32 %s29, 1
        %s187 = scalar_lea.sflag [#allocation3], %s186
        %s188 = sand.u32 %s29, 1
        %s189 = smul.addr %s188, 256
        %s190 = scalar_lea.vmem [#allocation2], %s189
        %p191 = pneg %p42
        %p192 = pneg %p39
        %p193 = pneg %p63
        %p194 = pneg %p60
        %p195 = pneg %p84
        %p196 = pneg %p81
        %p197 = pneg %p110
        %p198 = pneg %p107
        %s199 = sand.u32 %s97, 1
        %s200 = scalar_lea.sflag [#allocation4], %s199
        %s201 = sand.u32 %s97, 1
        %s202 = smul.addr %s201, 512
        %s203 = scalar_lea.vmem [#allocation7], %s202
        %s204 = smul.u32 32, %s21
        %s205 = smul.u32 32, %s21
        %v206 = vld [vmem:[%s177] sm:$0xff]
        %v207 = vld [vmem:[%s177 + $0x8] sm:$0xff]
        %v208 = vld [vmem:[%s177 + $0x10] sm:$0xff]
        %v209 = vld [vmem:[%s177 + $0x18] sm:$0xff]
        %v210 = vld [vmem:[%s177 + $0x20] sm:$0xff]
        %v211 = vld [vmem:[%s177 + $0x28] sm:$0xff]
        %v212 = vld [vmem:[%s177 + $0x30] sm:$0xff]
        %v213 = vld [vmem:[%s177 + $0x38] sm:$0xff]
        %v214 = vld [vmem:[%s177 + $0x40] sm:$0xff]
        %v215 = vld [vmem:[%s177 + $0x48] sm:$0xff]
        %v216 = vld [vmem:[%s177 + $0x50] sm:$0xff]
        %v217 = vld [vmem:[%s177 + $0x58] sm:$0xff]
        %v218 = vld [vmem:[%s177 + $0x60] sm:$0xff]
        %v219 = vld [vmem:[%s177 + $0x68] sm:$0xff]
        %v220 = vld [vmem:[%s177 + $0x70] sm:$0xff]
        %v221 = vld [vmem:[%s177 + $0x78] sm:$0xff]
        %v222 = vld [vmem:[%s177 + $0x80] sm:$0xff]
        %v223 = vld [vmem:[%s177 + $0x88] sm:$0xff]
        %v224 = vld [vmem:[%s177 + $0x90] sm:$0xff]
        %v225 = vld [vmem:[%s177 + $0x98] sm:$0xff]
        %v226 = vld [vmem:[%s177 + $0xa0] sm:$0xff]
        %v227 = vld [vmem:[%s177 + $0xa8] sm:$0xff]
        %v228 = vld [vmem:[%s177 + $0xb0] sm:$0xff]
        %v229 = vld [vmem:[%s177 + $0xb8] sm:$0xff]
        %v230 = vld [vmem:[%s177 + $0xc0] sm:$0xff]
        %v231 = vld [vmem:[%s177 + $0xc8] sm:$0xff]
        %v232 = vld [vmem:[%s177 + $0xd0] sm:$0xff]
        %v233 = vld [vmem:[%s177 + $0xd8] sm:$0xff]
        %v234 = vld [vmem:[%s177 + $0xe0] sm:$0xff]
        %v235 = vld [vmem:[%s177 + $0xe8] sm:$0xff]
        %v236 = vld [vmem:[%s177 + $0xf0] sm:$0xff]
        %v237 = vld [vmem:[%s177 + $0xf8] sm:$0xff]
        %v238 = vld [vmem:[#allocation5] sm:$0xff]
        %v239 = vld [vmem:[#allocation5 + $0x8] sm:$0xff]
        %v240 = vld [vmem:[#allocation5 + $0x10] sm:$0xff]
        %v241 = vld [vmem:[#allocation5 + $0x18] sm:$0xff]
        %v242 = vld [vmem:[#allocation5 + $0x20] sm:$0xff]
        %v243 = vld [vmem:[#allocation5 + $0x28] sm:$0xff]
        %v244 = vld [vmem:[#allocation5 + $0x30] sm:$0xff]
        %v245 = vld [vmem:[#allocation5 + $0x38] sm:$0xff]
        %v246 = vld [vmem:[#allocation5 + $0x40] sm:$0xff]
        %v247 = vld [vmem:[#allocation5 + $0x48] sm:$0xff]
        %v248 = vld [vmem:[#allocation5 + $0x50] sm:$0xff]
        %v249 = vld [vmem:[#allocation5 + $0x58] sm:$0xff]
        %v250 = vld [vmem:[#allocation5 + $0x60] sm:$0xff]
        %v251 = vld [vmem:[#allocation5 + $0x68] sm:$0xff]
        %v252 = vld [vmem:[#allocation5 + $0x70] sm:$0xff]
        %v253 = vld [vmem:[#allocation5 + $0x78] sm:$0xff]
        %v254 = vld [vmem:[#allocation5 + $0x80] sm:$0xff]
        %v255 = vld [vmem:[#allocation5 + $0x88] sm:$0xff]
        %v256 = vld [vmem:[#allocation5 + $0x90] sm:$0xff]
        %v257 = vld [vmem:[#allocation5 + $0x98] sm:$0xff]
        %v258 = vld [vmem:[#allocation5 + $0xa0] sm:$0xff]
        %v259 = vld [vmem:[#allocation5 + $0xa8] sm:$0xff]
        %v260 = vld [vmem:[#allocation5 + $0xb0] sm:$0xff]
        %v261 = vld [vmem:[#allocation5 + $0xb8] sm:$0xff]
        %v262 = vld [vmem:[#allocation5 + $0xc0] sm:$0xff]
        %v263 = vld [vmem:[#allocation5 + $0xc8] sm:$0xff]
        %v264 = vld [vmem:[#allocation5 + $0xd0] sm:$0xff]
        %v265 = vld [vmem:[#allocation5 + $0xd8] sm:$0xff]
        %v266 = vld [vmem:[#allocation5 + $0xe0] sm:$0xff]
        %v267 = vld [vmem:[#allocation5 + $0xe8] sm:$0xff]
        %v268 = vld [vmem:[#allocation5 + $0xf0] sm:$0xff]
        %v269 = vld [vmem:[#allocation5 + $0xf8] sm:$0xff]
        %v270 = vld [vmem:[%s2] sm:$0x3]
        %v272 = vlaneseq
        %v273 = vshrl.u32 %v272, 7
        %v274 = vsub.s32 0, %v273
        %v275 = vrot.slane %v270, %v274
        %v276 = vlaneseq
        %v277 = vshrl.u32 %v276, 7
        %v278 = vsub.s32 1, %v277
        %v279 = vrot.slane %v270, %v278
        %282 = vmatprep.subr.mxu0 %v239
        %283 = vmatpush1.msra.mxu0 %v238
        %284 = vmatprep.subr.mxu0 %v241
        %285 = vmatpush1.msra.mxu0 %v240
        %286 = vmatprep.subr.mxu0 %v243
        %287 = vmatpush1.msra.mxu0 %v242
        %288 = vmatprep.subr.mxu0 %v245
        %289 = vmatpush1.msra.mxu0 %v244
        %290 = vmatprep.subr.mxu0 %v247
        %291 = vmatpush1.msra.mxu0 %v246
        %292 = vmatprep.subr.mxu0 %v249
        %293 = vmatpush1.msra.mxu0 %v248
        %294 = vmatprep.subr.mxu0 %v251
        %295 = vmatpush1.msra.mxu0 %v250
        %296 = vmatprep.subr.mxu0 %v253
        %297 = vmatpush1.msra.mxu0 %v252
        %298 = vmatprep.subr.mxu0 %v255
        %299 = vmatpush1.msra.mxu0 %v254
        %300 = vmatprep.subr.mxu0 %v257
        %301 = vmatpush1.msra.mxu0 %v256
        %302 = vmatprep.subr.mxu0 %v259
        %303 = vmatpush1.msra.mxu0 %v258
        %304 = vmatprep.subr.mxu0 %v261
        %305 = vmatpush1.msra.mxu0 %v260
        %306 = vmatprep.subr.mxu0 %v263
        %307 = vmatpush1.msra.mxu0 %v262
        %308 = vmatprep.subr.mxu0 %v265
        %309 = vmatpush1.msra.mxu0 %v264
        %310 = vmatprep.subr.mxu0 %v267
        %311 = vmatpush1.msra.mxu0 %v266
        %312 = vmatprep.subr.mxu0 %v269
        %313 = vmatpush1.msra.mxu0 %v268
        %314 = vmatprep.subr.mxu0 0.0
        %315 = vmatpush1.msra.mxu0 0.0
        %316 = vmatprep.subr.mxu0 0.0
        %317 = vmatpush1.msra.mxu0 0.0
        %318 = vmatprep.subr.mxu0 0.0
        %319 = vmatpush1.msra.mxu0 0.0
        %320 = vmatprep.subr.mxu0 0.0
        %321 = vmatpush1.msra.mxu0 0.0
        %322 = vmatprep.subr.mxu0 0.0
        %323 = vmatpush1.msra.mxu0 0.0
        %324 = vmatprep.subr.mxu0 0.0
        %325 = vmatpush1.msra.mxu0 0.0
        %326 = vmatprep.subr.mxu0 0.0
        %327 = vmatpush1.msra.mxu0 0.0
        %328 = vmatprep.subr.mxu0 0.0
        %329 = vmatpush1.msra.mxu0 0.0
        %330 = vmatprep.subr.mxu0 0.0
        %331 = vmatpush1.msra.mxu0 0.0
        %332 = vmatprep.subr.mxu0 0.0
        %333 = vmatpush1.msra.mxu0 0.0
        %334 = vmatprep.subr.mxu0 0.0
        %335 = vmatpush1.msra.mxu0 0.0
        %336 = vmatprep.subr.mxu0 0.0
        %337 = vmatpush1.msra.mxu0 0.0
        %338 = vmatprep.subr.mxu0 0.0
        %339 = vmatpush1.msra.mxu0 0.0
        %340 = vmatprep.subr.mxu0 0.0
        %341 = vmatpush1.msra.mxu0 0.0
        %342 = vmatprep.subr.mxu0 0.0
        %343 = vmatpush1.msra.mxu0 0.0
        %344 = vmatprep.subr.mxu0 0.0
        %345 = vmatpush1.msra.mxu0 0.0
        %346 = vmatprep.mubr.f32.mxu0 0.0
        %347 = vmatmul.mubr.f32.gmra.mrb[0].mxu0 %v206
        %v348 = vpop.f32.mrb[0].mxu0
        %v349 = vadd.f32 %v275, %v348
        %v350 = vpop.f32.mrb[0].mxu0
        %v351 = vadd.f32 %v279, %v350
        %352 = vmatprep.mubr.f32.mxu0 0.0
        %353 = vmatmul.mubr.f32.gmra.mrb[0].mxu0 %v207
        %v354 = vpop.f32.mrb[0].mxu0
        %v355 = vadd.f32 %v275, %v354
        %v356 = vpop.f32.mrb[0].mxu0
        %v357 = vadd.f32 %v279, %v356
        %358 = vmatprep.mubr.f32.mxu0 0.0
        %359 = vmatmul.mubr.f32.gmra.mrb[0].mxu0 %v208
        %v360 = vpop.f32.mrb[0].mxu0
        %v361 = vadd.f32 %v275, %v360
        %v362 = vpop.f32.mrb[0].mxu0
        %v363 = vadd.f32 %v279, %v362
        %364 = vmatprep.mubr.f32.mxu0 0.0
        %365 = vmatmul.mubr.f32.gmra.mrb[0].mxu0 %v209
        %v366 = vpop.f32.mrb[0].mxu0
        %v367 = vadd.f32 %v275, %v366
        %v368 = vpop.f32.mrb[0].mxu0
        %v369 = vadd.f32 %v279, %v368
        %370 = vmatprep.mubr.f32.mxu0 0.0
        %371 = vmatmul.mubr.f32.gmra.mrb[0].mxu0 %v210
        %v372 = vpop.f32.mrb[0].mxu0
        %v373 = vadd.f32 %v275, %v372
        %v374 = vpop.f32.mrb[0].mxu0
        %v375 = vadd.f32 %v279, %v374
        %376 = vmatprep.mubr.f32.mxu0 0.0
        %377 = vmatmul.mubr.f32.gmra.mrb[0].mxu0 %v211
        %v378 = vpop.f32.mrb[0].mxu0
        %v379 = vadd.f32 %v275, %v378
        %v380 = vpop.f32.mrb[0].mxu0
        %v381 = vadd.f32 %v279, %v380
        %382 = vmatprep.mubr.f32.mxu0 0.0
        %383 = vmatmul.mubr.f32.gmra.mrb[0].mxu0 %v212
        %v384 = vpop.f32.mrb[0].mxu0
        %v385 = vadd.f32 %v275, %v384
        %v386 = vpop.f32.mrb[0].mxu0
        %v387 = vadd.f32 %v279, %v386
        %388 = vmatprep.mubr.f32.mxu0 0.0
        %389 = vmatmul.mubr.f32.gmra.mrb[0].mxu0 %v213
        %v390 = vpop.f32.mrb[0].mxu0
        %v391 = vadd.f32 %v275, %v390
        %v392 = vpop.f32.mrb[0].mxu0
        %v393 = vadd.f32 %v279, %v392
        %394 = vmatprep.mubr.f32.mxu0 0.0
        %395 = vmatmul.mubr.f32.gmra.mrb[0].mxu0 %v214
        %v396 = vpop.f32.mrb[0].mxu0
        %v397 = vadd.f32 %v275, %v396
        %v398 = vpop.f32.mrb[0].mxu0
        %v399 = vadd.f32 %v279, %v398
        %400 = vmatprep.mubr.f32.mxu0 0.0
        %401 = vmatmul.mubr.f32.gmra.mrb[0].mxu0 %v215
        %v402 = vpop.f32.mrb[0].mxu0
        %v403 = vadd.f32 %v275, %v402
        %v404 = vpop.f32.mrb[0].mxu0
        %v405 = vadd.f32 %v279, %v404
        %406 = vmatprep.mubr.f32.mxu0 0.0
        %407 = vmatmul.mubr.f32.gmra.mrb[0].mxu0 %v216
        %v408 = vpop.f32.mrb[0].mxu0
        %v409 = vadd.f32 %v275, %v408
        %v410 = vpop.f32.mrb[0].mxu0
        %v411 = vadd.f32 %v279, %v410
        %412 = vmatprep.mubr.f32.mxu0 0.0
        %413 = vmatmul.mubr.f32.gmra.mrb[0].mxu0 %v217
        %v414 = vpop.f32.mrb[0].mxu0
        %v415 = vadd.f32 %v275, %v414
        %v416 = vpop.f32.mrb[0].mxu0
        %v417 = vadd.f32 %v279, %v416
        %418 = vmatprep.mubr.f32.mxu0 0.0
        %419 = vmatmul.mubr.f32.gmra.mrb[0].mxu0 %v218
        %v420 = vpop.f32.mrb[0].mxu0
        %v421 = vadd.f32 %v275, %v420
        %v422 = vpop.f32.mrb[0].mxu0
        %v423 = vadd.f32 %v279, %v422
        %424 = vmatprep.mubr.f32.mxu0 0.0
        %425 = vmatmul.mubr.f32.gmra.mrb[0].mxu0 %v219
        %v426 = vpop.f32.mrb[0].mxu0
        %v427 = vadd.f32 %v275, %v426
        %v428 = vpop.f32.mrb[0].mxu0
        %v429 = vadd.f32 %v279, %v428
        %430 = vmatprep.mubr.f32.mxu0 0.0
        %431 = vmatmul.mubr.f32.gmra.mrb[0].mxu0 %v220
        %v432 = vpop.f32.mrb[0].mxu0
        %v433 = vadd.f32 %v275, %v432
        %v434 = vpop.f32.mrb[0].mxu0
        %v435 = vadd.f32 %v279, %v434
        %436 = vmatprep.mubr.f32.mxu0 0.0
        %437 = vmatmul.mubr.f32.gmra.mrb[0].mxu0 %v221
        %v438 = vpop.f32.mrb[0].mxu0
        %v439 = vadd.f32 %v275, %v438
        %v440 = vpop.f32.mrb[0].mxu0
        %v441 = vadd.f32 %v279, %v440
        %442 = vmatprep.mubr.f32.mxu0 0.0
        %443 = vmatmul.mubr.f32.gmra.mrb[0].mxu0 %v222
        %v444 = vpop.f32.mrb[0].mxu0
        %v445 = vadd.f32 %v275, %v444
        %v446 = vpop.f32.mrb[0].mxu0
        %v447 = vadd.f32 %v279, %v446
        %448 = vmatprep.mubr.f32.mxu0 0.0
        %449 = vmatmul.mubr.f32.gmra.mrb[0].mxu0 %v223
        %v450 = vpop.f32.mrb[0].mxu0
        %v451 = vadd.f32 %v275, %v450
        %v452 = vpop.f32.mrb[0].mxu0
        %v453 = vadd.f32 %v279, %v452
        %454 = vmatprep.mubr.f32.mxu0 0.0
        %455 = vmatmul.mubr.f32.gmra.mrb[0].mxu0 %v224
        %v456 = vpop.f32.mrb[0].mxu0
        %v457 = vadd.f32 %v275, %v456
        %v458 = vpop.f32.mrb[0].mxu0
        %v459 = vadd.f32 %v279, %v458
        %460 = vmatprep.mubr.f32.mxu0 0.0
        %461 = vmatmul.mubr.f32.gmra.mrb[0].mxu0 %v225
        %v462 = vpop.f32.mrb[0].mxu0
        %v463 = vadd.f32 %v275, %v462
        %v464 = vpop.f32.mrb[0].mxu0
        %v465 = vadd.f32 %v279, %v464
        %466 = vmatprep.mubr.f32.mxu0 0.0
        %467 = vmatmul.mubr.f32.gmra.mrb[0].mxu0 %v226
        %v468 = vpop.f32.mrb[0].mxu0
        %v469 = vadd.f32 %v275, %v468
        %v470 = vpop.f32.mrb[0].mxu0
        %v471 = vadd.f32 %v279, %v470
        %472 = vmatprep.mubr.f32.mxu0 0.0
        %473 = vmatmul.mubr.f32.gmra.mrb[0].mxu0 %v227
        %v474 = vpop.f32.mrb[0].mxu0
        %v475 = vadd.f32 %v275, %v474
        %v476 = vpop.f32.mrb[0].mxu0
        %v477 = vadd.f32 %v279, %v476
        %478 = vmatprep.mubr.f32.mxu0 0.0
        %479 = vmatmul.mubr.f32.gmra.mrb[0].mxu0 %v228
        %v480 = vpop.f32.mrb[0].mxu0
        %v481 = vadd.f32 %v275, %v480
        %v482 = vpop.f32.mrb[0].mxu0
        %v483 = vadd.f32 %v279, %v482
        %484 = vmatprep.mubr.f32.mxu0 0.0
        %485 = vmatmul.mubr.f32.gmra.mrb[0].mxu0 %v229
        %v486 = vpop.f32.mrb[0].mxu0
        %v487 = vadd.f32 %v275, %v486
        %v488 = vpop.f32.mrb[0].mxu0
        %v489 = vadd.f32 %v279, %v488
        %490 = vmatprep.mubr.f32.mxu0 0.0
        %491 = vmatmul.mubr.f32.gmra.mrb[0].mxu0 %v230
        %v492 = vpop.f32.mrb[0].mxu0
        %v493 = vadd.f32 %v275, %v492
        %v494 = vpop.f32.mrb[0].mxu0
        %v495 = vadd.f32 %v279, %v494
        %496 = vmatprep.mubr.f32.mxu0 0.0
        %497 = vmatmul.mubr.f32.gmra.mrb[0].mxu0 %v231
        %v498 = vpop.f32.mrb[0].mxu0
        %v499 = vadd.f32 %v275, %v498
        %v500 = vpop.f32.mrb[0].mxu0
        %v501 = vadd.f32 %v279, %v500
        %502 = vmatprep.mubr.f32.mxu0 0.0
        %503 = vmatmul.mubr.f32.gmra.mrb[0].mxu0 %v232
        %v504 = vpop.f32.mrb[0].mxu0
        %v505 = vadd.f32 %v275, %v504
        %v506 = vpop.f32.mrb[0].mxu0
        %v507 = vadd.f32 %v279, %v506
        %508 = vmatprep.mubr.f32.mxu0 0.0
        %509 = vmatmul.mubr.f32.gmra.mrb[0].mxu0 %v233
        %v510 = vpop.f32.mrb[0].mxu0
        %v511 = vadd.f32 %v275, %v510
        %v512 = vpop.f32.mrb[0].mxu0
        %v513 = vadd.f32 %v279, %v512
        %514 = vmatprep.mubr.f32.mxu0 0.0
        %515 = vmatmul.mubr.f32.gmra.mrb[0].mxu0 %v234
        %v516 = vpop.f32.mrb[0].mxu0
        %v517 = vadd.f32 %v275, %v516
        %v518 = vpop.f32.mrb[0].mxu0
        %v519 = vadd.f32 %v279, %v518
        %520 = vmatprep.mubr.f32.mxu0 0.0
        %521 = vmatmul.mubr.f32.gmra.mrb[0].mxu0 %v235
        %v522 = vpop.f32.mrb[0].mxu0
        %v523 = vadd.f32 %v275, %v522
        %v524 = vpop.f32.mrb[0].mxu0
        %v525 = vadd.f32 %v279, %v524
        %526 = vmatprep.mubr.f32.mxu0 0.0
        %527 = vmatmul.mubr.f32.gmra.mrb[0].mxu0 %v236
        %v528 = vpop.f32.mrb[0].mxu0
        %v529 = vadd.f32 %v275, %v528
        %v530 = vpop.f32.mrb[0].mxu0
        %v531 = vadd.f32 %v279, %v530
        %532 = vmatprep.mubr.f32.mxu0 0.0
        %533 = vmatmul.mubr.f32.gmra.mrb[0].mxu0 %v237
        %v534 = vpop.f32.mrb[0].mxu0
        %v535 = vadd.f32 %v275, %v534
        %v536 = vpop.f32.mrb[0].mxu0
        %v537 = vadd.f32 %v279, %v536
        %538 = vdwg.mxu0
        %v539 = vxor.u32 %v349, 2147483648
        %v540 = vxor.u32 %v351, 2147483648
        %v541 = vxor.u32 %v355, 2147483648
        %v542 = vxor.u32 %v357, 2147483648
        %v543 = vxor.u32 %v361, 2147483648
        %v544 = vxor.u32 %v363, 2147483648
        %v545 = vxor.u32 %v367, 2147483648
        %v546 = vxor.u32 %v369, 2147483648
        %v547 = vxor.u32 %v373, 2147483648
        %v548 = vxor.u32 %v375, 2147483648
        %v549 = vxor.u32 %v379, 2147483648
        %v550 = vxor.u32 %v381, 2147483648
        %v551 = vxor.u32 %v385, 2147483648
        %v552 = vxor.u32 %v387, 2147483648
        %v553 = vxor.u32 %v391, 2147483648
        %v554 = vxor.u32 %v393, 2147483648
        %v555 = vxor.u32 %v397, 2147483648
        %v556 = vxor.u32 %v399, 2147483648
        %v557 = vxor.u32 %v403, 2147483648
        %v558 = vxor.u32 %v405, 2147483648
        %v559 = vxor.u32 %v409, 2147483648
        %v560 = vxor.u32 %v411, 2147483648
        %v561 = vxor.u32 %v415, 2147483648
        %v562 = vxor.u32 %v417, 2147483648
        %v563 = vxor.u32 %v421, 2147483648
        %v564 = vxor.u32 %v423, 2147483648
        %v565 = vxor.u32 %v427, 2147483648
        %v566 = vxor.u32 %v429, 2147483648
        %v567 = vxor.u32 %v433, 2147483648
        %v568 = vxor.u32 %v435, 2147483648
        %v569 = vxor.u32 %v439, 2147483648
        %v570 = vxor.u32 %v441, 2147483648
        %v571 = vxor.u32 %v445, 2147483648
        %v572 = vxor.u32 %v447, 2147483648
        %v573 = vxor.u32 %v451, 2147483648
        %v574 = vxor.u32 %v453, 2147483648
        %v575 = vxor.u32 %v457, 2147483648
        %v576 = vxor.u32 %v459, 2147483648
        %v577 = vxor.u32 %v463, 2147483648
        %v578 = vxor.u32 %v465, 2147483648
        %v579 = vxor.u32 %v469, 2147483648
        %v580 = vxor.u32 %v471, 2147483648
        %v581 = vxor.u32 %v475, 2147483648
        %v582 = vxor.u32 %v477, 2147483648
        %v583 = vxor.u32 %v481, 2147483648
        %v584 = vxor.u32 %v483, 2147483648
        %v585 = vxor.u32 %v487, 2147483648
        %v586 = vxor.u32 %v489, 2147483648
        %v587 = vxor.u32 %v493, 2147483648
        %v588 = vxor.u32 %v495, 2147483648
        %v589 = vxor.u32 %v499, 2147483648
        %v590 = vxor.u32 %v501, 2147483648
        %v591 = vxor.u32 %v505, 2147483648
        %v592 = vxor.u32 %v507, 2147483648
        %v593 = vxor.u32 %v511, 2147483648
        %v594 = vxor.u32 %v513, 2147483648
        %v595 = vxor.u32 %v517, 2147483648
        %v596 = vxor.u32 %v519, 2147483648
        %v597 = vxor.u32 %v523, 2147483648
        %v598 = vxor.u32 %v525, 2147483648
        %v599 = vxor.u32 %v529, 2147483648
        %v600 = vxor.u32 %v531, 2147483648
        %v601 = vxor.u32 %v535, 2147483648
        %v602 = vxor.u32 %v537, 2147483648
        %v603 = vmul.f32 %v539, 1.442695
        %v604 = vpow.pop %v603
        %v605 = vmul.f32 %v540, 1.442695
        %v606 = vpow.pop %v605
        %v607 = vmul.f32 %v541, 1.442695
        %v608 = vpow.pop %v607
        %v609 = vmul.f32 %v542, 1.442695
        %v610 = vpow.pop %v609
        %v611 = vmul.f32 %v543, 1.442695
        %v612 = vpow.pop %v611
        %v613 = vmul.f32 %v544, 1.442695
        %v614 = vpow.pop %v613
        %v615 = vmul.f32 %v545, 1.442695
        %v616 = vpow.pop %v615
        %v617 = vmul.f32 %v546, 1.442695
        %v618 = vpow.pop %v617
        %v619 = vmul.f32 %v547, 1.442695
        %v620 = vpow.pop %v619
        %v621 = vmul.f32 %v548, 1.442695
        %v622 = vpow.pop %v621
        %v623 = vmul.f32 %v549, 1.442695
        %v624 = vpow.pop %v623
        %v625 = vmul.f32 %v550, 1.442695
        %v626 = vpow.pop %v625
        %v627 = vmul.f32 %v551, 1.442695
        %v628 = vpow.pop %v627
        %v629 = vmul.f32 %v552, 1.442695
        %v630 = vpow.pop %v629
        %v631 = vmul.f32 %v553, 1.442695
        %v632 = vpow.pop %v631
        %v633 = vmul.f32 %v554, 1.442695
        %v634 = vpow.pop %v633
        %v635 = vmul.f32 %v555, 1.442695
        %v636 = vpow.pop %v635
        %v637 = vmul.f32 %v556, 1.442695
        %v638 = vpow.pop %v637
        %v639 = vmul.f32 %v557, 1.442695
        %v640 = vpow.pop %v639
        %v641 = vmul.f32 %v558, 1.442695
        %v642 = vpow.pop %v641
        %v643 = vmul.f32 %v559, 1.442695
        %v644 = vpow.pop %v643
        %v645 = vmul.f32 %v560, 1.442695
        %v646 = vpow.pop %v645
        %v647 = vmul.f32 %v561, 1.442695
        %v648 = vpow.pop %v647
        %v649 = vmul.f32 %v562, 1.442695
        %v650 = vpow.pop %v649
        %v651 = vmul.f32 %v563, 1.442695
        %v652 = vpow.pop %v651
        %v653 = vmul.f32 %v564, 1.442695
        %v654 = vpow.pop %v653
        %v655 = vmul.f32 %v565, 1.442695
        %v656 = vpow.pop %v655
        %v657 = vmul.f32 %v566, 1.442695
        %v658 = vpow.pop %v657
        %v659 = vmul.f32 %v567, 1.442695
        %v660 = vpow.pop %v659
        %v661 = vmul.f32 %v568, 1.442695
        %v662 = vpow.pop %v661
        %v663 = vmul.f32 %v569, 1.442695
        %v664 = vpow.pop %v663
        %v665 = vmul.f32 %v570, 1.442695
        %v666 = vpow.pop %v665
        %v667 = vmul.f32 %v571, 1.442695
        %v668 = vpow.pop %v667
        %v669 = vmul.f32 %v572, 1.442695
        %v670 = vpow.pop %v669
        %v671 = vmul.f32 %v573, 1.442695
        %v672 = vpow.pop %v671
        %v673 = vmul.f32 %v574, 1.442695
        %v674 = vpow.pop %v673
        %v675 = vmul.f32 %v575, 1.442695
        %v676 = vpow.pop %v675
        %v677 = vmul.f32 %v576, 1.442695
        %v678 = vpow.pop %v677
        %v679 = vmul.f32 %v577, 1.442695
        %v680 = vpow.pop %v679
        %v681 = vmul.f32 %v578, 1.442695
        %v682 = vpow.pop %v681
        %v683 = vmul.f32 %v579, 1.442695
        %v684 = vpow.pop %v683
        %v685 = vmul.f32 %v580, 1.442695
        %v686 = vpow.pop %v685
        %v687 = vmul.f32 %v581, 1.442695
        %v688 = vpow.pop %v687
        %v689 = vmul.f32 %v582, 1.442695
        %v690 = vpow.pop %v689
        %v691 = vmul.f32 %v583, 1.442695
        %v692 = vpow.pop %v691
        %v693 = vmul.f32 %v584, 1.442695
        %v694 = vpow.pop %v693
        %v695 = vmul.f32 %v585, 1.442695
        %v696 = vpow.pop %v695
        %v697 = vmul.f32 %v586, 1.442695
        %v698 = vpow.pop %v697
        %v699 = vmul.f32 %v587, 1.442695
        %v700 = vpow.pop %v699
        %v701 = vmul.f32 %v588, 1.442695
        %v702 = vpow.pop %v701
        %v703 = vmul.f32 %v589, 1.442695
        %v704 = vpow.pop %v703
        %v705 = vmul.f32 %v590, 1.442695
        %v706 = vpow.pop %v705
        %v707 = vmul.f32 %v591, 1.442695
        %v708 = vpow.pop %v707
        %v709 = vmul.f32 %v592, 1.442695
        %v710 = vpow.pop %v709
        %v711 = vmul.f32 %v593, 1.442695
        %v712 = vpow.pop %v711
        %v713 = vmul.f32 %v594, 1.442695
        %v714 = vpow.pop %v713
        %v715 = vmul.f32 %v595, 1.442695
        %v716 = vpow.pop %v715
        %v717 = vmul.f32 %v596, 1.442695
        %v718 = vpow.pop %v717
        %v719 = vmul.f32 %v597, 1.442695
        %v720 = vpow.pop %v719
        %v721 = vmul.f32 %v598, 1.442695
        %v722 = vpow.pop %v721
        %v723 = vmul.f32 %v599, 1.442695
        %v724 = vpow.pop %v723
        %v725 = vmul.f32 %v600, 1.442695
        %v726 = vpow.pop %v725
        %v727 = vmul.f32 %v601, 1.442695
        %v728 = vpow.pop %v727
        %v729 = vmul.f32 %v602, 1.442695
        %v730 = vpow.pop %v729
        %v731 = vadd.f32 %v604, 1.0
        %v732 = vadd.f32 %v606, 1.0
        %v733 = vadd.f32 %v608, 1.0
        %v734 = vadd.f32 %v610, 1.0
        %v735 = vadd.f32 %v612, 1.0
        %v736 = vadd.f32 %v614, 1.0
        %v737 = vadd.f32 %v616, 1.0
        %v738 = vadd.f32 %v618, 1.0
        %v739 = vadd.f32 %v620, 1.0
        %v740 = vadd.f32 %v622, 1.0
        %v741 = vadd.f32 %v624, 1.0
        %v742 = vadd.f32 %v626, 1.0
        %v743 = vadd.f32 %v628, 1.0
        %v744 = vadd.f32 %v630, 1.0
        %v745 = vadd.f32 %v632, 1.0
        %v746 = vadd.f32 %v634, 1.0
        %v747 = vadd.f32 %v636, 1.0
        %v748 = vadd.f32 %v638, 1.0
        %v749 = vadd.f32 %v640, 1.0
        %v750 = vadd.f32 %v642, 1.0
        %v751 = vadd.f32 %v644, 1.0
        %v752 = vadd.f32 %v646, 1.0
        %v753 = vadd.f32 %v648, 1.0
        %v754 = vadd.f32 %v650, 1.0
        %v755 = vadd.f32 %v652, 1.0
        %v756 = vadd.f32 %v654, 1.0
        %v757 = vadd.f32 %v656, 1.0
        %v758 = vadd.f32 %v658, 1.0
        %v759 = vadd.f32 %v660, 1.0
        %v760 = vadd.f32 %v662, 1.0
        %v761 = vadd.f32 %v664, 1.0
        %v762 = vadd.f32 %v666, 1.0
        %v763 = vadd.f32 %v668, 1.0
        %v764 = vadd.f32 %v670, 1.0
        %v765 = vadd.f32 %v672, 1.0
        %v766 = vadd.f32 %v674, 1.0
        %v767 = vadd.f32 %v676, 1.0
        %v768 = vadd.f32 %v678, 1.0
        %v769 = vadd.f32 %v680, 1.0
        %v770 = vadd.f32 %v682, 1.0
        %v771 = vadd.f32 %v684, 1.0
        %v772 = vadd.f32 %v686, 1.0
        %v773 = vadd.f32 %v688, 1.0
        %v774 = vadd.f32 %v690, 1.0
        %v775 = vadd.f32 %v692, 1.0
        %v776 = vadd.f32 %v694, 1.0
        %v777 = vadd.f32 %v696, 1.0
        %v778 = vadd.f32 %v698, 1.0
        %v779 = vadd.f32 %v700, 1.0
        %v780 = vadd.f32 %v702, 1.0
        %v781 = vadd.f32 %v704, 1.0
        %v782 = vadd.f32 %v706, 1.0
        %v783 = vadd.f32 %v708, 1.0
        %v784 = vadd.f32 %v710, 1.0
        %v785 = vadd.f32 %v712, 1.0
        %v786 = vadd.f32 %v714, 1.0
        %v787 = vadd.f32 %v716, 1.0
        %v788 = vadd.f32 %v718, 1.0
        %v789 = vadd.f32 %v720, 1.0
        %v790 = vadd.f32 %v722, 1.0
        %v791 = vadd.f32 %v724, 1.0
        %v792 = vadd.f32 %v726, 1.0
        %v793 = vadd.f32 %v728, 1.0
        %v794 = vadd.f32 %v730, 1.0
        %v795 = vrcp.pop %v731
        %v796 = vmul.f32 1.0, %v795
        %v797 = vrcp.pop %v732
        %v798 = vmul.f32 1.0, %v797
        %v799 = vrcp.pop %v733
        %v800 = vmul.f32 1.0, %v799
        %v801 = vrcp.pop %v734
        %v802 = vmul.f32 1.0, %v801
        %v803 = vrcp.pop %v735
        %v804 = vmul.f32 1.0, %v803
        %v805 = vrcp.pop %v736
        %v806 = vmul.f32 1.0, %v805
        %v807 = vrcp.pop %v737
        %v808 = vmul.f32 1.0, %v807
        %v809 = vrcp.pop %v738
        %v810 = vmul.f32 1.0, %v809
        %v811 = vrcp.pop %v739
        %v812 = vmul.f32 1.0, %v811
        %v813 = vrcp.pop %v740
        %v814 = vmul.f32 1.0, %v813
        %v815 = vrcp.pop %v741
        %v816 = vmul.f32 1.0, %v815
        %v817 = vrcp.pop %v742
        %v818 = vmul.f32 1.0, %v817
        %v819 = vrcp.pop %v743
        %v820 = vmul.f32 1.0, %v819
        %v821 = vrcp.pop %v744
        %v822 = vmul.f32 1.0, %v821
        %v823 = vrcp.pop %v745
        %v824 = vmul.f32 1.0, %v823
        %v825 = vrcp.pop %v746
        %v826 = vmul.f32 1.0, %v825
        %v827 = vrcp.pop %v747
        %v828 = vmul.f32 1.0, %v827
        %v829 = vrcp.pop %v748
        %v830 = vmul.f32 1.0, %v829
        %v831 = vrcp.pop %v749
        %v832 = vmul.f32 1.0, %v831
        %v833 = vrcp.pop %v750
        %v834 = vmul.f32 1.0, %v833
        %v835 = vrcp.pop %v751
        %v836 = vmul.f32 1.0, %v835
        %v837 = vrcp.pop %v752
        %v838 = vmul.f32 1.0, %v837
        %v839 = vrcp.pop %v753
        %v840 = vmul.f32 1.0, %v839
        %v841 = vrcp.pop %v754
        %v842 = vmul.f32 1.0, %v841
        %v843 = vrcp.pop %v755
        %v844 = vmul.f32 1.0, %v843
        %v845 = vrcp.pop %v756
        %v846 = vmul.f32 1.0, %v845
        %v847 = vrcp.pop %v757
        %v848 = vmul.f32 1.0, %v847
        %v849 = vrcp.pop %v758
        %v850 = vmul.f32 1.0, %v849
        %v851 = vrcp.pop %v759
        %v852 = vmul.f32 1.0, %v851
        %v853 = vrcp.pop %v760
        %v854 = vmul.f32 1.0, %v853
        %v855 = vrcp.pop %v761
        %v856 = vmul.f32 1.0, %v855
        %v857 = vrcp.pop %v762
        %v858 = vmul.f32 1.0, %v857
        %v859 = vrcp.pop %v763
        %v860 = vmul.f32 1.0, %v859
        %v861 = vrcp.pop %v764
        %v862 = vmul.f32 1.0, %v861
        %v863 = vrcp.pop %v765
        %v864 = vmul.f32 1.0, %v863
        %v865 = vrcp.pop %v766
        %v866 = vmul.f32 1.0, %v865
        %v867 = vrcp.pop %v767
        %v868 = vmul.f32 1.0, %v867
        %v869 = vrcp.pop %v768
        %v870 = vmul.f32 1.0, %v869
        %v871 = vrcp.pop %v769
        %v872 = vmul.f32 1.0, %v871
        %v873 = vrcp.pop %v770
        %v874 = vmul.f32 1.0, %v873
        %v875 = vrcp.pop %v771
        %v876 = vmul.f32 1.0, %v875
        %v877 = vrcp.pop %v772
        %v878 = vmul.f32 1.0, %v877
        %v879 = vrcp.pop %v773
        %v880 = vmul.f32 1.0, %v879
        %v881 = vrcp.pop %v774
        %v882 = vmul.f32 1.0, %v881
        %v883 = vrcp.pop %v775
        %v884 = vmul.f32 1.0, %v883
        %v885 = vrcp.pop %v776
        %v886 = vmul.f32 1.0, %v885
        %v887 = vrcp.pop %v777
        %v888 = vmul.f32 1.0, %v887
        %v889 = vrcp.pop %v778
        %v890 = vmul.f32 1.0, %v889
        %v891 = vrcp.pop %v779
        %v892 = vmul.f32 1.0, %v891
        %v893 = vrcp.pop %v780
        %v894 = vmul.f32 1.0, %v893
        %v895 = vrcp.pop %v781
        %v896 = vmul.f32 1.0, %v895
        %v897 = vrcp.pop %v782
        %v898 = vmul.f32 1.0, %v897
        %v899 = vrcp.pop %v783
        %v900 = vmul.f32 1.0, %v899
        %v901 = vrcp.pop %v784
        %v902 = vmul.f32 1.0, %v901
        %v903 = vrcp.pop %v785
        %v904 = vmul.f32 1.0, %v903
        %v905 = vrcp.pop %v786
        %v906 = vmul.f32 1.0, %v905
        %v907 = vrcp.pop %v787
        %v908 = vmul.f32 1.0, %v907
        %v909 = vrcp.pop %v788
        %v910 = vmul.f32 1.0, %v909
        %v911 = vrcp.pop %v789
        %v912 = vmul.f32 1.0, %v911
        %v913 = vrcp.pop %v790
        %v914 = vmul.f32 1.0, %v913
        %v915 = vrcp.pop %v791
        %v916 = vmul.f32 1.0, %v915
        %v917 = vrcp.pop %v792
        %v918 = vmul.f32 1.0, %v917
        %v919 = vrcp.pop %v793
        %v920 = vmul.f32 1.0, %v919
        %v921 = vrcp.pop %v794
        %v922 = vmul.f32 1.0, %v921
        %v923 = vmul.f32 %v349, %v796
        %v924 = vmul.f32 %v351, %v798
        %v925 = vmul.f32 %v355, %v800
        %v926 = vmul.f32 %v357, %v802
        %v927 = vmul.f32 %v361, %v804
        %v928 = vmul.f32 %v363, %v806
        %v929 = vmul.f32 %v367, %v808
        %v930 = vmul.f32 %v369, %v810
        %v931 = vmul.f32 %v373, %v812
        %v932 = vmul.f32 %v375, %v814
        %v933 = vmul.f32 %v379, %v816
        %v934 = vmul.f32 %v381, %v818
        %v935 = vmul.f32 %v385, %v820
        %v936 = vmul.f32 %v387, %v822
        %v937 = vmul.f32 %v391, %v824
        %v938 = vmul.f32 %v393, %v826
        %v939 = vmul.f32 %v397, %v828
        %v940 = vmul.f32 %v399, %v830
        %v941 = vmul.f32 %v403, %v832
        %v942 = vmul.f32 %v405, %v834
        %v943 = vmul.f32 %v409, %v836
        %v944 = vmul.f32 %v411, %v838
        %v945 = vmul.f32 %v415, %v840
        %v946 = vmul.f32 %v417, %v842
        %v947 = vmul.f32 %v421, %v844
        %v948 = vmul.f32 %v423, %v846
        %v949 = vmul.f32 %v427, %v848
        %v950 = vmul.f32 %v429, %v850
        %v951 = vmul.f32 %v433, %v852
        %v952 = vmul.f32 %v435, %v854
        %v953 = vmul.f32 %v439, %v856
        %v954 = vmul.f32 %v441, %v858
        %v955 = vmul.f32 %v445, %v860
        %v956 = vmul.f32 %v447, %v862
        %v957 = vmul.f32 %v451, %v864
        %v958 = vmul.f32 %v453, %v866
        %v959 = vmul.f32 %v457, %v868
        %v960 = vmul.f32 %v459, %v870
        %v961 = vmul.f32 %v463, %v872
        %v962 = vmul.f32 %v465, %v874
        %v963 = vmul.f32 %v469, %v876
        %v964 = vmul.f32 %v471, %v878
        %v965 = vmul.f32 %v475, %v880
        %v966 = vmul.f32 %v477, %v882
        %v967 = vmul.f32 %v481, %v884
        %v968 = vmul.f32 %v483, %v886
        %v969 = vmul.f32 %v487, %v888
        %v970 = vmul.f32 %v489, %v890
        %v971 = vmul.f32 %v493, %v892
        %v972 = vmul.f32 %v495, %v894
        %v973 = vmul.f32 %v499, %v896
        %v974 = vmul.f32 %v501, %v898
        %v975 = vmul.f32 %v505, %v900
        %v976 = vmul.f32 %v507, %v902
        %v977 = vmul.f32 %v511, %v904
        %v978 = vmul.f32 %v513, %v906
        %v979 = vmul.f32 %v517, %v908
        %v980 = vmul.f32 %v519, %v910
        %v981 = vmul.f32 %v523, %v912
        %v982 = vmul.f32 %v525, %v914
        %v983 = vmul.f32 %v529, %v916
        %v984 = vmul.f32 %v531, %v918
        %v985 = vmul.f32 %v535, %v920
        %v986 = vmul.f32 %v537, %v922
        %987 = vst [vmem:[%s203] sm:$0xff] %v923
        %988 = vst [vmem:[%s203 + $0x8] sm:$0xff] %v924
        %989 = vst [vmem:[%s203 + $0x10] sm:$0xff] %v925
        %990 = vst [vmem:[%s203 + $0x18] sm:$0xff] %v926
        %991 = vst [vmem:[%s203 + $0x20] sm:$0xff] %v927
        %992 = vst [vmem:[%s203 + $0x28] sm:$0xff] %v928
        %993 = vst [vmem:[%s203 + $0x30] sm:$0xff] %v929
        %994 = vst [vmem:[%s203 + $0x38] sm:$0xff] %v930
        %995 = vst [vmem:[%s203 + $0x40] sm:$0xff] %v931
        %996 = vst [vmem:[%s203 + $0x48] sm:$0xff] %v932
        %997 = vst [vmem:[%s203 + $0x50] sm:$0xff] %v933
        %998 = vst [vmem:[%s203 + $0x58] sm:$0xff] %v934
        %999 = vst [vmem:[%s203 + $0x60] sm:$0xff] %v935
        %1000 = vst [vmem:[%s203 + $0x68] sm:$0xff] %v936
        %1001 = vst [vmem:[%s203 + $0x70] sm:$0xff] %v937
        %1002 = vst [vmem:[%s203 + $0x78] sm:$0xff] %v938
        %1003 = vst [vmem:[%s203 + $0x80] sm:$0xff] %v939
        %1004 = vst [vmem:[%s203 + $0x88] sm:$0xff] %v940
        %1005 = vst [vmem:[%s203 + $0x90] sm:$0xff] %v941
        %1006 = vst [vmem:[%s203 + $0x98] sm:$0xff] %v942
        %1007 = vst [vmem:[%s203 + $0xa0] sm:$0xff] %v943
        %1008 = vst [vmem:[%s203 + $0xa8] sm:$0xff] %v944
        %1009 = vst [vmem:[%s203 + $0xb0] sm:$0xff] %v945
        %1010 = vst [vmem:[%s203 + $0xb8] sm:$0xff] %v946
        %1011 = vst [vmem:[%s203 + $0xc0] sm:$0xff] %v947
        %1012 = vst [vmem:[%s203 + $0xc8] sm:$0xff] %v948
        %1013 = vst [vmem:[%s203 + $0xd0] sm:$0xff] %v949
        %1014 = vst [vmem:[%s203 + $0xd8] sm:$0xff] %v950
        %1015 = vst [vmem:[%s203 + $0xe0] sm:$0xff] %v951
        %1016 = vst [vmem:[%s203 + $0xe8] sm:$0xff] %v952
        %1017 = vst [vmem:[%s203 + $0xf0] sm:$0xff] %v953
        %1018 = vst [vmem:[%s203 + $0xf8] sm:$0xff] %v954
        %1019 = vst [vmem:[%s203 + $0x100] sm:$0xff] %v955
        %1020 = vst [vmem:[%s203 + $0x108] sm:$0xff] %v956
        %1021 = vst [vmem:[%s203 + $0x110] sm:$0xff] %v957
        %1022 = vst [vmem:[%s203 + $0x118] sm:$0xff] %v958
        %1023 = vst [vmem:[%s203 + $0x120] sm:$0xff] %v959
        %1024 = vst [vmem:[%s203 + $0x128] sm:$0xff] %v960
        %1025 = vst [vmem:[%s203 + $0x130] sm:$0xff] %v961
        %1026 = vst [vmem:[%s203 + $0x138] sm:$0xff] %v962
        %1027 = vst [vmem:[%s203 + $0x140] sm:$0xff] %v963
        %1028 = vst [vmem:[%s203 + $0x148] sm:$0xff] %v964
        %1029 = vst [vmem:[%s203 + $0x150] sm:$0xff] %v965
        %1030 = vst [vmem:[%s203 + $0x158] sm:$0xff] %v966
        %1031 = vst [vmem:[%s203 + $0x160] sm:$0xff] %v967
        %1032 = vst [vmem:[%s203 + $0x168] sm:$0xff] %v968
        %1033 = vst [vmem:[%s203 + $0x170] sm:$0xff] %v969
        %1034 = vst [vmem:[%s203 + $0x178] sm:$0xff] %v970
        %1035 = vst [vmem:[%s203 + $0x180] sm:$0xff] %v971
        %1036 = vst [vmem:[%s203 + $0x188] sm:$0xff] %v972
        %1037 = vst [vmem:[%s203 + $0x190] sm:$0xff] %v973
        %1038 = vst [vmem:[%s203 + $0x198] sm:$0xff] %v974
        %1039 = vst [vmem:[%s203 + $0x1a0] sm:$0xff] %v975
        %1040 = vst [vmem:[%s203 + $0x1a8] sm:$0xff] %v976
        %1041 = vst [vmem:[%s203 + $0x1b0] sm:$0xff] %v977
        %1042 = vst [vmem:[%s203 + $0x1b8] sm:$0xff] %v978
        %1043 = vst [vmem:[%s203 + $0x1c0] sm:$0xff] %v979
        %1044 = vst [vmem:[%s203 + $0x1c8] sm:$0xff] %v980
        %1045 = vst [vmem:[%s203 + $0x1d0] sm:$0xff] %v981
        %1046 = vst [vmem:[%s203 + $0x1d8] sm:$0xff] %v982
        %1047 = vst [vmem:[%s203 + $0x1e0] sm:$0xff] %v983
        %1048 = vst [vmem:[%s203 + $0x1e8] sm:$0xff] %v984
        %1049 = vst [vmem:[%s203 + $0x1f0] sm:$0xff] %v985
        %1050 = vst [vmem:[%s203 + $0x1f8] sm:$0xff] %v986
        %s1051 = sand.u32 %s97, 1
        %s1052 = scalar_lea.sflag [#allocation4], %s1051
        %s1053 = sand.u32 %s97, 1
        %s1054 = smul.addr %s1053, 512
        %s1055 = scalar_lea.vmem [#allocation7], %s1054
        // Predicated region
        $region41: #{tpu_custom_call.1} parent=31 // pred_check
          %p1056 = pneg %p107
        $region42: #{tpu_custom_call.1} parent=31 // pred_check_branch
          %1058 = sbr.rel (%p1056) target = $region44
        $region43: #{tpu_custom_call.1} parent=31 // pred_region
          %s1059 = smul.u32 32, %s21
          %s1061 = ssub.s32 8192, 8192
          %1062 = vsyncadd %s1052, %s1061
          %s1063 = smul.addr %s1059, 2
          %s1064 = smul.addr %s1063, 128
          %s1065 = scalar_lea.hbm %s3, %s1064
          %s1066 = sshll.u32 %s1055, 4
          %s1067 = int_to_ptr.vmem [resolvable:$true] %s1066
          %1072 = dma.vmem_to_hbm [thread:$0]  %s1067, 8192, %s1065, %s1052, 256, 256, 16
        $region44: #{tpu_custom_call.1} parent=31 // pred_fallthru
          _
      $region32: #{tpu_custom_call.1} parent=5 // pred_fallthru
        _
      %p1073 = scmp.le.s32.totalorder 2, %s16
      // Predicated region
      $region45: #{tpu_custom_call.1} parent=5 // pred_check
        %p1074 = pneg %p1073
      $region46: #{tpu_custom_call.1} parent=5 // pred_check_branch
        %1076 = sbr.rel (%p1074) target = $region48
      $region47: #{tpu_custom_call.1} parent=5 // pred_region
        %s1077 = ssub.s32 %s16, 2
        // Predicated region
        $region49: #{tpu_custom_call.1} parent=47 // pred_check
          %p1078 = pneg %p113
        $region50: #{tpu_custom_call.1} parent=47 // pred_check_branch
          %1080 = sbr.rel (%p1078) target = $region52
        $region51: #{tpu_custom_call.1} parent=47 // pred_region
          %s1081 = sand.u32 %s98, 1
          %s1082 = scalar_lea.sflag [#allocation4], %s1081
          %s1083 = sand.u32 %s98, 1
          %s1084 = smul.addr %s1083, 512
          %s1085 = scalar_lea.vmem [#allocation7], %s1084
          %1086 = dma.done %s1082, 8192
        $region52: #{tpu_custom_call.1} parent=47 // pred_fallthru
          _
      $region48: #{tpu_custom_call.1} parent=5 // pred_fallthru
        _
    $region6: #{tpu_custom_call.1} parent=1 // loop_footer
      %s20 = sadd.s32 1, %s16
    $region7: #{tpu_custom_call.1} parent=1 // loop_footer_branch
      %15 = sbr.rel target = $region3
    $region8: #{tpu_custom_call.1} parent=1 // loop_exit
      _
    %1087 = vsyncpa [#allocation3], 1
    %s1088 = scalar_lea.sflag [#allocation3], 1
    %1089 = vsyncpa %s1088, 1
    %1090 = vsyncpa [#allocation6], 1
    %1091 = vsyncpa [#allocation4], 1
    %s1092 = scalar_lea.sflag [#allocation4], 1
    %1093 = vsyncpa %s1092, 1

</llo_original>
